<compile_context>
chip_gen: v7x
topology: tpu7x:2x2x1
jax: 0.10.0
libtpu: 0.0.40
codegen_flags: <defaults>
</compile_context>

<pallas_src>
import numpy as np
import jax
import jax.numpy as jnp
from jax import lax
from jax.experimental import pallas as pl
from jax.experimental.pallas import tpu as pltpu

# Small, deterministic model dimensions. D = 128 keeps output stores lane-dense.
B, S, V, D = 2, 8, 32, 128


def encoder_kernel(tok_ref, keep_ref, tbl_ref, out_ref):
    """One-hot MXU gather of embedding rows, then zero padded positions.

    tok_ref : VMEM (N, 1) i32   flattened token ids (N = B*S)
    keep_ref: VMEM (N, 1) f32   1.0 at valid positions, 0.0 at padding
    tbl_ref : VMEM (V, D) f32   embedding table (fully resident on-chip)
    out_ref : VMEM (N, D) f32   masked token embeddings
    """
    n = tok_ref.shape[0]
    v = tbl_ref.shape[0]

    tok = tok_ref[...]                                          # (N, 1) i32
    vocab_ids = lax.broadcasted_iota(jnp.int32, (n, v), 1)      # (N, V)
    onehot = (tok == vocab_ids).astype(tbl_ref.dtype)           # (N, V) 0/1

    # Gather via MXU: (N, V) @ (V, D) -> (N, D), f32 accumulation.
    emb = jnp.dot(onehot, tbl_ref[...],
                  preferred_element_type=jnp.float32)           # (N, D)

    # Zero padded positions; one lane-dense (N, 128) unmasked store.
    out_ref[...] = (emb * keep_ref[...]).astype(out_ref.dtype)


def fairseq_encoder_forward(src_tokens, src_lengths, embed_tokens):
    """Pallas-backed encoder forward.

    Returns (encoder_out, encoder_padding_mask) mirroring the fairseq encoder
    output convention (batch-major; mask is int8, 1 at padded positions).
    """
    b, s = src_tokens.shape
    v, d = embed_tokens.shape
    n = b * s

    # Padding mask: trivial VPU compare; keep it in plain JAX (saves a second
    # lane-sparse output DMA inside the kernel).
    positions = jnp.arange(s, dtype=jnp.int32)[None, :]                 # (1, S)
    pad_mask = (positions >= src_lengths[:, None]).astype(jnp.int8)     # (B, S)

    tok_flat = src_tokens.reshape(n, 1).astype(jnp.int32)               # (N, 1)
    keep_flat = (1 - pad_mask).reshape(n, 1).astype(embed_tokens.dtype)  # (N, 1)

    out_flat = pl.pallas_call(
        encoder_kernel,
        out_shape=jax.ShapeDtypeStruct((n, d), embed_tokens.dtype),
        # Single grid step: every array is one full-extent VMEM block.
        in_specs=[
            pl.BlockSpec(memory_space=pltpu.MemorySpace.VMEM),  # tokens
            pl.BlockSpec(memory_space=pltpu.MemorySpace.VMEM),  # keep mask
            pl.BlockSpec(memory_space=pltpu.MemorySpace.VMEM),  # embed table
        ],
        out_specs=pl.BlockSpec(memory_space=pltpu.MemorySpace.VMEM),
    )(tok_flat, keep_flat, embed_tokens)

    return out_flat.reshape(b, s, d), pad_mask


if __name__ == "__main__":
    key = jax.random.PRNGKey(0)
    k_tok, k_tbl = jax.random.split(key)

    # Deterministic synthetic inputs / parameters (no checkpoint loading).
    src_tokens = jax.random.randint(k_tok, (B, S), 0, V, dtype=jnp.int32)
    src_lengths = jnp.array([S, S - 3], dtype=jnp.int32)
    embed_tokens = (jax.random.normal(k_tbl, (V, D), dtype=jnp.float32)
                    * (1.0 / np.sqrt(D))).astype(jnp.float32)

    enc_out, pad_mask = fairseq_encoder_forward(src_tokens, src_lengths, embed_tokens)
    enc_out = jax.block_until_ready(enc_out)
    pad_mask = jax.block_until_ready(pad_mask)

    # Pure-JAX reference for a quick correctness check.
    ref_emb = jnp.take(embed_tokens, src_tokens, axis=0)                   # (B, S, D)
    positions = jnp.arange(S, dtype=jnp.int32)[None, :]                    # (1, S)
    ref_mask = (positions >= src_lengths[:, None]).astype(jnp.int8)        # (B, S)
    ref_out = jnp.where(ref_mask[..., None] == 1, 0.0, ref_emb)

    assert enc_out.shape == (B, S, D) and enc_out.dtype == jnp.float32
    assert pad_mask.shape == (B, S) and pad_mask.dtype == jnp.int8
    np.testing.assert_allclose(np.asarray(enc_out), np.asarray(ref_out),
                               rtol=1e-5, atol=1e-5)
    np.testing.assert_array_equal(np.asarray(pad_mask), np.asarray(ref_mask))

    print("KERNEL_OK")
</pallas_src>

<mosaic_0001>
module attributes {stable_mosaic.version = 11 : i64} {
  func.func @encoder_kernel(%arg0: memref<16x1xi32, #tpu.memory_space<vmem>>, %arg1: memref<16x1xf32, #tpu.memory_space<vmem>>, %arg2: memref<32x128xf32, #tpu.memory_space<vmem>>, %arg3: memref<16x128xf32, #tpu.memory_space<vmem>>) attributes {dimension_semantics = [], scalar_prefetch = 0 : i64, scratch_operands = 0 : i64, tpu.core_type = #tpu.core_type<tc>} {
    %c0 = arith.constant 0 : index
    %c0_0 = arith.constant 0 : index
    %0 = vector.load %arg0[%c0, %c0_0] : memref<16x1xi32, #tpu.memory_space<vmem>>, vector<16x1xi32>
    %1 = tpu.iota {dimensions = array<i32: 1>} : vector<16x32xi32>
    %2 = vector.broadcast %0 : vector<16x1xi32> to vector<16x32xi32>
    %3 = arith.cmpi eq, %2, %1 : vector<16x32xi32>
    %4 = arith.extui %3 : vector<16x32xi1> to vector<16x32xi32>
    %5 = arith.sitofp %4 : vector<16x32xi32> to vector<16x32xf32>
    %c0_1 = arith.constant 0 : index
    %c0_2 = arith.constant 0 : index
    %6 = vector.load %arg2[%c0_1, %c0_2] : memref<32x128xf32, #tpu.memory_space<vmem>>, vector<32x128xf32>
    %cst = arith.constant dense<0.000000e+00> : vector<16x128xf32>
    %7 = tpu.matmul %5, %6, %cst {dimension_numbers = #tpu.dot_dimension_numbers<[1], [0], [0], [1], [0, 0, 1, 1], [], []>} : vector<16x32xf32>, vector<32x128xf32>, vector<16x128xf32> -> vector<16x128xf32>
    %c0_3 = arith.constant 0 : index
    %c0_4 = arith.constant 0 : index
    %8 = vector.load %arg1[%c0_3, %c0_4] : memref<16x1xf32, #tpu.memory_space<vmem>>, vector<16x1xf32>
    %9 = vector.broadcast %8 : vector<16x1xf32> to vector<16x128xf32>
    %10 = arith.mulf %7, %9 : vector<16x128xf32>
    %c0_5 = arith.constant 0 : index
    %c0_6 = arith.constant 0 : index
    %11 = vector.load %arg3[%c0_5, %c0_6] : memref<16x128xf32, #tpu.memory_space<vmem>>, vector<16x128xf32>
    tpu.vector_store %arg3[%c0_5, %c0_6], %10 {strides = array<i32>} : memref<16x128xf32, #tpu.memory_space<vmem>>, vector<16x128xf32>,
    return
  }
}

</mosaic_0001>

<llo_original>
// kernel: tpu_custom_call.1
$region0: #{tpu_custom_call.1}
  #allocation0 [shape = 'u32[]', space=smem, size = 0x4, offset = 0x4, fixed_abs, tag = 'smem constant byte address 0x4 - core index']
  #allocation1 [shape = 'u32[144,128]{1,0:T(1,128)}', space=vmem, size = 0x12000, scoped, tag = 'internal scratch']
  %s0 = inlined_call_operand.vmem [shape: s32[16,1], index: 0, kind: input, shape index: {}]
  %s1 = inlined_call_operand.vmem [shape: f32[16,1], index: 1, kind: input, shape index: {}]
  %s2 = inlined_call_operand.vmem [shape: f32[32,128], index: 2, kind: input, shape index: {}]
  %s3 = inlined_call_operand.hbm [shape: f32[16,128], index: 3, kind: output, shape index: {}]
  %s4 = sld [smem:[#allocation0]]
  $region22: #{tpu_custom_call.1} parent=0
    _
  %s6 = ssub.s32 1, %s4
  %s7 = scalar_select 0, %s6, %s4
  $region1: #{tpu_custom_call.1} parent=0
    #allocation2 [shape = 'u8[8192]{0}', space=vmem, size = 0x2000, scoped, tag = 'output window, operand 0, single buffered']
    #allocation3 [shape = 's32[1]{0}', space=sflag, size = 0x4, scoped, tag = 'scoped memory for tpu_custom_call.1']
    %8 = vsyncpa [#allocation3], 0
    // Predicated region
    $region2: #{tpu_custom_call.1} parent=1 // pred_check
      _
    $region3: #{tpu_custom_call.1} parent=1 // pred_check_branch
      %10 = sbr.rel (0) target = $region5
    $region4: #{tpu_custom_call.1} parent=1 // pred_region
      _
    $region5: #{tpu_custom_call.1} parent=1 // pred_fallthru
      _
    // Predicated region
    $region6: #{tpu_custom_call.1} parent=1 // pred_check
      _
    $region7: #{tpu_custom_call.1} parent=1 // pred_check_branch
      %12 = sbr.rel (0) target = $region9
    $region8: #{tpu_custom_call.1} parent=1 // pred_region
      _
    $region9: #{tpu_custom_call.1} parent=1 // pred_fallthru
      _
    // Predicated region
    $region10: #{tpu_custom_call.1} parent=1 // pred_check
      _
    $region11: #{tpu_custom_call.1} parent=1 // pred_check_branch
      %14 = sbr.rel (0) target = $region13
    $region12: #{tpu_custom_call.1} parent=1 // pred_region
      _
    $region13: #{tpu_custom_call.1} parent=1 // pred_fallthru
      _
    %v15 = vld [vmem:[%s0] sm:$0xff]
    %v16 = vld [vmem:[%s0 + $0x8] sm:$0xff]
    %v17 = vlaneseq
    %v18 = vand.u32 %v17, 127
    %19 = vset.pattern.permute.xlu0 0
    %20 = vperm.xlu0 %19, %v15
    %v21 = vpop.permute.xlu0 %20
    %22 = vset.pattern.permute.xlu0 0
    %23 = vperm.xlu0 %22, %v16
    %v24 = vpop.permute.xlu0 %23
    %vm25 = vcmp.eq.s32.totalorder %v21, %v18
    %vm26 = vcmp.eq.s32.totalorder %v24, %v18
    %v27 = vsel %vm25, 1, 0
    %v28 = vsel %vm26, 1, 0
    %v29 = vcvt.s32.f32 %v27
    %v30 = vcvt.s32.f32 %v28
    %v31 = vld [vmem:[%s2] sm:$0xff]
    %v32 = vld [vmem:[%s2 + $0x8] sm:$0xff]
    %v33 = vld [vmem:[%s2 + $0x10] sm:$0xff]
    %v34 = vld [vmem:[%s2 + $0x18] sm:$0xff]
    %vm35 = vcmask 261120
    %v37 = vsel %vm35, %v29, 0
    %v40 = vsel %vm35, %v30, 0
    %42 = vmatprep.subr.mxu0 0.0
    %43 = vmatpush1.msra.mxu0 %v31
    %44 = vmatprep.subr.mxu0 0.0
    %45 = vmatpush1.msra.mxu0 %v32
    %46 = vmatprep.subr.mxu0 0.0
    %47 = vmatpush1.msra.mxu0 %v33
    %48 = vmatprep.subr.mxu0 0.0
    %49 = vmatpush1.msra.mxu0 %v34
    %50 = vmatprep.subr.mxu0 0.0
    %51 = vmatpush1.msra.mxu0 0.0
    %52 = vmatprep.subr.mxu0 0.0
    %53 = vmatpush1.msra.mxu0 0.0
    %54 = vmatprep.subr.mxu0 0.0
    %55 = vmatpush1.msra.mxu0 0.0
    %56 = vmatprep.subr.mxu0 0.0
    %57 = vmatpush1.msra.mxu0 0.0
    %58 = vmatprep.subr.mxu0 0.0
    %59 = vmatpush1.msra.mxu0 0.0
    %60 = vmatprep.subr.mxu0 0.0
    %61 = vmatpush1.msra.mxu0 0.0
    %62 = vmatprep.subr.mxu0 0.0
    %63 = vmatpush1.msra.mxu0 0.0
    %64 = vmatprep.subr.mxu0 0.0
    %65 = vmatpush1.msra.mxu0 0.0
    %66 = vmatprep.subr.mxu0 0.0
    %67 = vmatpush1.msra.mxu0 0.0
    %68 = vmatprep.subr.mxu0 0.0
    %69 = vmatpush1.msra.mxu0 0.0
    %70 = vmatprep.subr.mxu0 0.0
    %71 = vmatpush1.msra.mxu0 0.0
    %72 = vmatprep.subr.mxu0 0.0
    %73 = vmatpush1.msra.mxu0 0.0
    %74 = vmatprep.subr.mxu0 0.0
    %75 = vmatpush1.msra.mxu0 0.0
    %76 = vmatprep.subr.mxu0 0.0
    %77 = vmatpush1.msra.mxu0 0.0
    %78 = vmatprep.subr.mxu0 0.0
    %79 = vmatpush1.msra.mxu0 0.0
    %80 = vmatprep.subr.mxu0 0.0
    %81 = vmatpush1.msra.mxu0 0.0
    %82 = vmatprep.subr.mxu0 0.0
    %83 = vmatpush1.msra.mxu0 0.0
    %84 = vmatprep.subr.mxu0 0.0
    %85 = vmatpush1.msra.mxu0 0.0
    %86 = vmatprep.subr.mxu0 0.0
    %87 = vmatpush1.msra.mxu0 0.0
    %88 = vmatprep.subr.mxu0 0.0
    %89 = vmatpush1.msra.mxu0 0.0
    %90 = vmatprep.subr.mxu0 0.0
    %91 = vmatpush1.msra.mxu0 0.0
    %92 = vmatprep.subr.mxu0 0.0
    %93 = vmatpush1.msra.mxu0 0.0
    %94 = vmatprep.subr.mxu0 0.0
    %95 = vmatpush1.msra.mxu0 0.0
    %96 = vmatprep.subr.mxu0 0.0
    %97 = vmatpush1.msra.mxu0 0.0
    %98 = vmatprep.subr.mxu0 0.0
    %99 = vmatpush1.msra.mxu0 0.0
    %100 = vmatprep.subr.mxu0 0.0
    %101 = vmatpush1.msra.mxu0 0.0
    %102 = vmatprep.subr.mxu0 0.0
    %103 = vmatpush1.msra.mxu0 0.0
    %104 = vmatprep.subr.mxu0 0.0
    %105 = vmatpush1.msra.mxu0 0.0
    %106 = vmatprep.mubr.f32.mxu0 0.0
    %107 = vmatmul.mubr.f32.gmra.mrb[0].mxu0 %v37
    %v108 = vpop.f32.mrb[0].mxu0
    %v109 = vadd.f32 0.0, %v108
    %v110 = vpop.f32.mrb[0].mxu0
    %111 = vmatprep.mubr.f32.mxu0 0.0
    %112 = vmatmul.mubr.f32.gmra.mrb[0].mxu0 %v40
    %v113 = vpop.f32.mrb[0].mxu0
    %v114 = vadd.f32 0.0, %v113
    %v115 = vpop.f32.mrb[0].mxu0
    %116 = vdwg.mxu0
    %v117 = vld [vmem:[%s1] sm:$0xff]
    %v118 = vld [vmem:[%s1 + $0x8] sm:$0xff]
    %120 = vset.pattern.permute.xlu0 0
    %121 = vperm.xlu0 %120, %v117
    %v122 = vpop.permute.xlu0 %121
    %125 = vset.pattern.permute.xlu0 0
    %126 = vperm.xlu0 %125, %v118
    %v127 = vpop.permute.xlu0 %126
    %v129 = vmul.f32 %v109, %v122
    %v130 = vmul.f32 %v114, %v127
    %131 = vst [vmem:[#allocation2] sm:$0xff] %v129
    %132 = vst [vmem:[#allocation2 + $0x8] sm:$0xff] %v130
    // Predicated region
    $region14: #{tpu_custom_call.1} parent=1 // pred_check
      _
    $region15: #{tpu_custom_call.1} parent=1 // pred_check_branch
      %134 = sbr.rel (0) target = $region17
    $region16: #{tpu_custom_call.1} parent=1 // pred_region
      %s136 = ssub.s32 256, 256
      %137 = vsyncadd [#allocation3], %s136
      %s138 = sshll.u32 [#allocation2], 4
      %s139 = int_to_ptr.vmem [resolvable:$true] %s138
      %144 = dma.vmem_to_hbm [thread:$0]  %s139, 256, %s3, [#allocation3], 128, 128, 8
    $region17: #{tpu_custom_call.1} parent=1 // pred_fallthru
      _
    // Predicated region
    $region18: #{tpu_custom_call.1} parent=1 // pred_check
      _
    $region19: #{tpu_custom_call.1} parent=1 // pred_check_branch
      %146 = sbr.rel (0) target = $region21
    $region20: #{tpu_custom_call.1} parent=1 // pred_region
      %147 = dma.done [#allocation3], 256
    $region21: #{tpu_custom_call.1} parent=1 // pred_fallthru
      _
    %148 = vsyncpa [#allocation3], 1

</llo_original>
